<compile_context>
chip_gen: v6e
topology: v6e:2x2x1
jax: 0.10.0
libtpu: 0.0.40
codegen_flags: <defaults>
</compile_context>

<pallas_src>
import functools

import jax
import jax.numpy as jnp
from jax import lax
from jax.experimental import pallas as pl
from jax.experimental.pallas import tpu as pltpu


def _mha_kernel(x_ref, wqkv_ref, wo_ref, bo_ref, o_ref, acc_ref,
                *, num_heads, head_dim):
    h = pl.program_id(1)

    @pl.when(h == 0)
    def _init():
        acc_ref[...] = jnp.zeros_like(acc_ref)

    xb = x_ref[0]                       # (N, E)
    w_h = wqkv_ref[0]                   # (E, 3*hd) pre-transposed fused q|k|v (Q pre-scaled)
    wo_h = wo_ref[0]                    # (hd, E)   pre-transposed out-proj rows for this head

    # Fused per-head Q/K/V projection: one MXU matmul, no transpose.
    qkv = jnp.dot(xb, w_h, preferred_element_type=jnp.float32)      # (N, 3*hd)

    q = qkv[:, :head_dim]               # softmax scale already folded into the weight
    k = qkv[:, head_dim:2 * head_dim]
    v = qkv[:, 2 * head_dim:]

    # scores = q @ k^T without materializing a transpose (contract on head_dim).
    scores = lax.dot_general(q, k, (((1,), (1,)), ((), ())),
                             preferred_element_type=jnp.float32)    # (N, N)

    m = jnp.max(scores, axis=-1, keepdims=True)
    e = jnp.exp(scores - m)                                         # (N, N)
    denom = jnp.sum(e, axis=-1, keepdims=True)                      # (N, 1)

    # Deferred softmax normalization: scale the (N, hd) context, not the
    # (N, N) probabilities.
    ctx = jnp.dot(e, v, preferred_element_type=jnp.float32)         # (N, hd)
    ctx = ctx * pl.reciprocal(denom, approx=False)

    # Output projection decomposed per head: out = sum_h ctx_h @ Wo^T[h] + b.
    acc_ref[...] += jnp.dot(ctx, wo_h, preferred_element_type=jnp.float32)

    @pl.when(h == num_heads - 1)
    def _finalize():
        o_ref[0] = (acc_ref[...] + bo_ref[...]).astype(o_ref.dtype)


def multi_head_attention(x, wq, wk, wv, wo, bo, *, num_heads):
    B, N, E = x.shape
    head_dim = E // num_heads
    scale = head_dim ** (-0.5)

    # --- One-time weight re-layout in the wrapper (no on-chip transposes) ---
    # PyTorch Linear: y = x @ W.T.  W.T has shape (E_in, E_out).
    def head_cols(w):                         # (E, H, hd)
        return w.T.reshape(E, num_heads, head_dim)

    # Fused head-major QKV weight: (H, E, 3*hd); [:, :, :hd]=Q (pre-scaled by
    # the softmax scale), [hd:2hd]=K, [2hd:]=V.
    wqkv = jnp.concatenate(
        [head_cols(wq) * scale, head_cols(wk), head_cols(wv)], axis=-1
    ).transpose(1, 0, 2)                      # (H, E, 3*hd)

    # Out-projection rows grouped by head: Wo^T reshaped to (H, hd, E).
    wo_heads = wo.T.reshape(num_heads, head_dim, E)

    bo2 = bo.reshape(1, E)

    kernel = functools.partial(
        _mha_kernel, num_heads=num_heads, head_dim=head_dim)

    return pl.pallas_call(
        kernel,
        out_shape=jax.ShapeDtypeStruct((B, N, E), x.dtype),
        grid_spec=pltpu.PrefetchScalarGridSpec(
            num_scalar_prefetch=0,
            grid=(B, num_heads),
            in_specs=[
                # x: same block for every head of a batch element (no re-DMA).
                pl.BlockSpec((1, N, E), lambda b, h: (b, 0, 0)),
                # Per-head fused QKV weight tile.
                pl.BlockSpec((1, E, 3 * head_dim), lambda b, h: (h, 0, 0)),
                # Per-head out-projection rows.
                pl.BlockSpec((1, head_dim, E), lambda b, h: (h, 0, 0)),
                # Out-projection bias (grid-invariant).
                pl.BlockSpec((1, E), lambda b, h: (0, 0)),
            ],
            out_specs=pl.BlockSpec((1, N, E), lambda b, h: (b, 0, 0)),
            scratch_shapes=[pltpu.VMEM((N, E), jnp.float32)],
        ),
        compiler_params=pltpu.CompilerParams(
            dimension_semantics=("parallel", "arbitrary")),
    )(x, wqkv, wo_heads, bo2)


def _reference(x, wq, wk, wv, wo, bo, num_heads):
    """Pure-JAX reference mirroring the PyTorch forward pass."""
    B, N, E = x.shape
    hd = E // num_heads
    scale = hd ** (-0.5)

    def proj(w):
        y = jnp.einsum("bne,fe->bnf", x, w)
        return y.reshape(B, N, num_heads, hd).transpose(0, 2, 1, 3)

    q, k, v = proj(wq), proj(wk), proj(wv)
    scores = jnp.einsum("bhqd,bhkd->bhqk", q, k) * scale
    weights = jax.nn.softmax(scores, axis=-1)
    out = jnp.einsum("bhqk,bhkd->bhqd", weights, v)
    out = out.transpose(0, 2, 1, 3).reshape(B, N, E)
    return jnp.einsum("bne,fe->bnf", out, wo) + bo


if __name__ == "__main__":
    # Small shapes consistent with the module: batch=2, seq(num_patches)=8,
    # embed_dim=32, num_heads=4 (head_dim=8).
    B, N, E, H = 2, 8, 32, 4

    key = jax.random.PRNGKey(0)
    kx, kq, kk, kv, ko, kb = jax.random.split(key, 6)

    x = jax.random.normal(kx, (B, N, E), dtype=jnp.float32)
    wq = jax.random.normal(kq, (E, E), dtype=jnp.float32) * 0.1
    wk = jax.random.normal(kk, (E, E), dtype=jnp.float32) * 0.1
    wv = jax.random.normal(kv, (E, E), dtype=jnp.float32) * 0.1
    wo = jax.random.normal(ko, (E, E), dtype=jnp.float32) * 0.1
    bo = jax.random.normal(kb, (E,), dtype=jnp.float32) * 0.1

    out = multi_head_attention(x, wq, wk, wv, wo, bo, num_heads=H)
    out = jax.block_until_ready(out)

    ref = _reference(x, wq, wk, wv, wo, bo, H)
    assert out.shape == (B, N, E)
    assert jnp.allclose(out, ref, atol=2e-5, rtol=1e-5), "mismatch vs reference"

    print("KERNEL_OK")
</pallas_src>

<mosaic_0001>
module attributes {stable_mosaic.version = 11 : i64} {
  func.func @_mha_kernel(%arg0: i32, %arg1: i32, %arg2: memref<1x8x32xf32, #tpu.memory_space<vmem>>, %arg3: memref<1x32x24xf32, #tpu.memory_space<vmem>>, %arg4: memref<1x8x32xf32, #tpu.memory_space<vmem>>, %arg5: memref<1x32xf32, #tpu.memory_space<vmem>>, %arg6: memref<1x8x32xf32, #tpu.memory_space<vmem>>, %arg7: memref<8x32xf32, #tpu.memory_space<vmem>>) attributes {dimension_semantics = [#tpu.dimension_semantics<parallel>, #tpu.dimension_semantics<arbitrary>], iteration_bounds = array<i64: 2, 4>, scalar_prefetch = 0 : i64, scratch_operands = 1 : i64, tpu.core_type = #tpu.core_type<tc>, window_params = [{transform_indices = @transform_0, window_bounds = array<i64: 1, 8, 32>}, {transform_indices = @transform_1, window_bounds = array<i64: 1, 32, 24>}, {transform_indices = @transform_2, window_bounds = array<i64: 1, 8, 32>}, {pipeline_mode = #tpu.pipeline_mode<synchronous>, transform_indices = @transform_3, window_bounds = array<i64: 1, 32>}, {transform_indices = @transform_4, window_bounds = array<i64: 1, 8, 32>}]} {
    %c0_i32 = arith.constant 0 : i32
    %0 = arith.cmpi eq, %arg1, %c0_i32 : i32
    %1 = arith.extui %0 : i1 to i32
    %c0_i32_0 = arith.constant 0 : i32
    %2 = arith.cmpi ne, %1, %c0_i32_0 : i32
    scf.if %2 {
      %cst_19 = arith.constant 0.000000e+00 : f32
      %32 = vector.broadcast %cst_19 : f32 to vector<8x32xf32>
      %c0_20 = arith.constant 0 : index
      %c0_21 = arith.constant 0 : index
      %33 = vector.load %arg7[%c0_20, %c0_21] : memref<8x32xf32, #tpu.memory_space<vmem>>, vector<8x32xf32>
      tpu.vector_store %arg7[%c0_20, %c0_21], %32 {strides = array<i32>} : memref<8x32xf32, #tpu.memory_space<vmem>>, vector<8x32xf32>,
    } else {
    }
    %c0 = arith.constant 0 : index
    %c0_1 = arith.constant 0 : index
    %c0_2 = arith.constant 0 : index
    %3 = vector.load %arg2[%c0, %c0_1, %c0_2] : memref<1x8x32xf32, #tpu.memory_space<vmem>>, vector<1x8x32xf32>
    %4 = vector.shape_cast %3 : vector<1x8x32xf32> to vector<8x32xf32>
    %c0_3 = arith.constant 0 : index
    %c0_4 = arith.constant 0 : index
    %c0_5 = arith.constant 0 : index
    %5 = vector.load %arg3[%c0_3, %c0_4, %c0_5] : memref<1x32x24xf32, #tpu.memory_space<vmem>>, vector<1x32x24xf32>
    %6 = vector.shape_cast %5 : vector<1x32x24xf32> to vector<32x24xf32>
    %c0_6 = arith.constant 0 : index
    %c0_7 = arith.constant 0 : index
    %c0_8 = arith.constant 0 : index
    %7 = vector.load %arg4[%c0_6, %c0_7, %c0_8] : memref<1x8x32xf32, #tpu.memory_space<vmem>>, vector<1x8x32xf32>
    %8 = vector.shape_cast %7 : vector<1x8x32xf32> to vector<8x32xf32>
    %cst = arith.constant dense<0.000000e+00> : vector<8x24xf32>
    %9 = tpu.matmul %4, %6, %cst {dimension_numbers = #tpu.dot_dimension_numbers<[1], [0], [0], [1], [0, 0, 1, 1], [], []>} : vector<8x32xf32>, vector<32x24xf32>, vector<8x24xf32> -> vector<8x24xf32>
    %10 = vector.extract_strided_slice %9 {offsets = [0, 0], sizes = [8, 8], strides = [1, 1]} : vector<8x24xf32> to vector<8x8xf32>
    %11 = vector.extract_strided_slice %9 {offsets = [0, 8], sizes = [8, 8], strides = [1, 1]} : vector<8x24xf32> to vector<8x8xf32>
    %12 = vector.extract_strided_slice %9 {offsets = [0, 16], sizes = [8, 8], strides = [1, 1]} : vector<8x24xf32> to vector<8x8xf32>
    %cst_9 = arith.constant dense<0.000000e+00> : vector<8x8xf32>
    %13 = tpu.matmul %10, %11, %cst_9 {dimension_numbers = #tpu.dot_dimension_numbers<[1], [1], [0], [0], [0, 0, 1, 0], [], []>} : vector<8x8xf32>, vector<8x8xf32>, vector<8x8xf32> -> vector<8x8xf32>
    %cst_10 = arith.constant dense<0xFF800000> : vector<8xf32>
    %14 = vector.multi_reduction <maximumf>, %13, %cst_10 [1] : vector<8x8xf32> to vector<8xf32>
    %15 = vector.shape_cast %14 : vector<8xf32> to vector<8x1xf32>
    %16 = vector.broadcast %15 : vector<8x1xf32> to vector<8x8xf32>
    %17 = arith.subf %13, %16 : vector<8x8xf32>
    %18 = math.exp %17 : vector<8x8xf32>
    %cst_11 = arith.constant dense<0.000000e+00> : vector<8xf32>
    %19 = vector.multi_reduction <add>, %18, %cst_11 [1] : vector<8x8xf32> to vector<8xf32>
    %20 = vector.shape_cast %19 : vector<8xf32> to vector<8x1xf32>
    %cst_12 = arith.constant dense<0.000000e+00> : vector<8x8xf32>
    %21 = tpu.matmul %18, %12, %cst_12 {dimension_numbers = #tpu.dot_dimension_numbers<[1], [0], [0], [1], [0, 0, 1, 1], [], []>} : vector<8x8xf32>, vector<8x8xf32>, vector<8x8xf32> -> vector<8x8xf32>
    %22 = tpu.reciprocal %20 : vector<8x1xf32> -> vector<8x1xf32>
    %23 = vector.broadcast %22 : vector<8x1xf32> to vector<8x8xf32>
    %24 = arith.mulf %21, %23 : vector<8x8xf32>
    %c0_13 = arith.constant 0 : index
    %c0_14 = arith.constant 0 : index
    %25 = vector.load %arg7[%c0_13, %c0_14] : memref<8x32xf32, #tpu.memory_space<vmem>>, vector<8x32xf32>
    %cst_15 = arith.constant dense<0.000000e+00> : vector<8x32xf32>
    %26 = tpu.matmul %24, %8, %cst_15 {dimension_numbers = #tpu.dot_dimension_numbers<[1], [0], [0], [1], [0, 0, 1, 1], [], []>} : vector<8x8xf32>, vector<8x32xf32>, vector<8x32xf32> -> vector<8x32xf32>
    %27 = arith.addf %25, %26 : vector<8x32xf32>
    %c0_16 = arith.constant 0 : index
    %c0_17 = arith.constant 0 : index
    %28 = vector.load %arg7[%c0_16, %c0_17] : memref<8x32xf32, #tpu.memory_space<vmem>>, vector<8x32xf32>
    tpu.vector_store %arg7[%c0_16, %c0_17], %27 {strides = array<i32>} : memref<8x32xf32, #tpu.memory_space<vmem>>, vector<8x32xf32>,
    %c3_i32 = arith.constant 3 : i32
    %29 = arith.cmpi eq, %arg1, %c3_i32 : i32
    %30 = arith.extui %29 : i1 to i32
    %c0_i32_18 = arith.constant 0 : i32
    %31 = arith.cmpi ne, %30, %c0_i32_18 : i32
    scf.if %31 {
      %c0_19 = arith.constant 0 : index
      %c0_20 = arith.constant 0 : index
      %32 = vector.load %arg7[%c0_19, %c0_20] : memref<8x32xf32, #tpu.memory_space<vmem>>, vector<8x32xf32>
      %c0_21 = arith.constant 0 : index
      %c0_22 = arith.constant 0 : index
      %33 = vector.load %arg5[%c0_21, %c0_22] : memref<1x32xf32, #tpu.memory_space<vmem>>, vector<1x32xf32>
      %34 = vector.broadcast %33 : vector<1x32xf32> to vector<8x32xf32>
      %35 = arith.addf %32, %34 : vector<8x32xf32>
      %c0_23 = arith.constant 0 : index
      %c0_24 = arith.constant 0 : index
      %c0_25 = arith.constant 0 : index
      %36 = vector.load %arg6[%c0_23, %c0_24, %c0_25] : memref<1x8x32xf32, #tpu.memory_space<vmem>>, vector<1x8x32xf32>
      %37 = vector.shape_cast %36 : vector<1x8x32xf32> to vector<8x32xf32>
      %38 = vector.shape_cast %35 : vector<8x32xf32> to vector<1x8x32xf32>
      tpu.vector_store %arg6[%c0_23, %c0_24, %c0_25], %38 {strides = array<i32>} : memref<1x8x32xf32, #tpu.memory_space<vmem>>, vector<1x8x32xf32>,
    } else {
    }
    return
  }
  func.func @transform_0(%arg0: i32, %arg1: i32) -> (i32, i32, i32) {
    %c0_i32 = arith.constant 0 : i32
    %c0_i32_0 = arith.constant 0 : i32
    %c0_i32_1 = arith.constant 0 : i32
    return %arg0, %c0_i32, %c0_i32_0 : i32, i32, i32
  }
  func.func @transform_1(%arg0: i32, %arg1: i32) -> (i32, i32, i32) {
    %c0_i32 = arith.constant 0 : i32
    %c0_i32_0 = arith.constant 0 : i32
    %c0_i32_1 = arith.constant 0 : i32
    return %arg1, %c0_i32, %c0_i32_0 : i32, i32, i32
  }
  func.func @transform_2(%arg0: i32, %arg1: i32) -> (i32, i32, i32) {
    %c0_i32 = arith.constant 0 : i32
    %c0_i32_0 = arith.constant 0 : i32
    %c0_i32_1 = arith.constant 0 : i32
    return %arg1, %c0_i32, %c0_i32_0 : i32, i32, i32
  }
  func.func @transform_3(%arg0: i32, %arg1: i32) -> (i32, i32) {
    %c0_i32 = arith.constant 0 : i32
    %c0_i32_0 = arith.constant 0 : i32
    %c0_i32_1 = arith.constant 0 : i32
    return %c0_i32, %c0_i32_0 : i32, i32
  }
  func.func @transform_4(%arg0: i32, %arg1: i32) -> (i32, i32, i32) {
    %c0_i32 = arith.constant 0 : i32
    %c0_i32_0 = arith.constant 0 : i32
    %c0_i32_1 = arith.constant 0 : i32
    return %arg0, %c0_i32, %c0_i32_0 : i32, i32, i32
  }
}

</mosaic_0001>

<llo_original>
// kernel: tpu_custom_call.1
$region0: #{tpu_custom_call.1}
  #allocation0 [shape = 'u32[]', space=smem, size = 0x4, offset = 0x4, fixed_abs, tag = 'smem constant byte address 0x4 - core index']
  #allocation1 [shape = 'u32[144,128]{1,0:T(1,128)}', space=vmem, size = 0x12000, scoped, tag = 'internal scratch']
  #allocation2 [shape = 'f32[8,32]{1,0:T(8,128)}', space=vmem, size = 0x1000, scoped, tag = 'scratch operand']
  %s0 = inlined_call_operand.vmem [shape: f32[2,8,32], index: 0, kind: input, shape index: {}]
  %s1 = inlined_call_operand.vmem [shape: f32[4,32,24], index: 1, kind: input, shape index: {}]
  %s2 = inlined_call_operand.vmem [shape: f32[4,8,32], index: 2, kind: input, shape index: {}]
  %s3 = inlined_call_operand.vmem [shape: f32[1,32], index: 3, kind: input, shape index: {}]
  %s4 = inlined_call_operand.hbm [shape: f32[2,8,32], index: 4, kind: output, shape index: {}]
  %s5 = sld [smem:[#allocation0]]
  $region57: #{tpu_custom_call.1} parent=0
    _
  %s7 = ssub.s32 1, %s5
  %s8 = scalar_select 0, %s7, %s5
  $region1: #{tpu_custom_call.1} parent=0
    #allocation3 [shape = 'u8[8192]{0}', space=vmem, size = 0x2000, scoped, tag = 'output window, operand 0']
    #allocation4 [shape = 's32[2]{0}', space=sflag, size = 0x8, scoped, tag = 'scoped memory for tpu_custom_call.1']
    %9 = vsyncpa [#allocation4], 0
    %s10 = scalar_lea.sflag [#allocation4], 1
    %11 = vsyncpa %s10, 0
    loop: start=0, step=1, limit=10
    $region2: #{tpu_custom_call.1} parent=1 // loop_pre_header
      _
    $region3: #{tpu_custom_call.1} parent=1 // loop_header
      %s13 = sphi 0, %s17
      %p14 = scmp.ge.s32.totalorder %s13, 10
      %s20 = sphi 0, %s32
      %s21 = sphi 0, %s28
      %s22 = sphi 0, %s20
      %s23 = sphi 0, %s21
      %s24 = sphi 0, %s22
      %s25 = sphi 0, %s23
      %s35 = sphi 0, %s37
      %s38 = sphi 0, %s35
      %s39 = sphi 0, %s38
      %s55 = sphi 0, %s39
      %s61 = sphi 0, %s63
      %s64 = sphi 0, %s61
      %s65 = sphi 0, %s64
      %s81 = sphi 0, %s65
      %s87 = sphi 0, %s89
      %s90 = sphi 0, %s87
      %s91 = sphi 0, %s90
      %s107 = sphi 0, %s91
      %s111 = sphi 0, %s111
      %s113 = sphi 0, %s111
      %s114 = sphi 0, %s113
      %s128 = sphi 0, %s114
      %s134 = sphi 0, %s136
      %s137 = sphi 0, %s134
      %s138 = sphi 0, %s137
      %s154 = sphi 0, %s138
    $region4: #{tpu_custom_call.1} parent=1 // loop_header_branch
      %16 = sbr.rel (%p14) target = $region8
    $region5: #{tpu_custom_call.1} parent=1 // loop_body
      %s18 = ssub.s32 %s13, 1
      %s19 = ssub.s32 %s13, 2
      %s26 = sadd.s32 1, %s21
      %p27 = scmp.ge.s32.totalorder %s26, 4
      %s28 = scalar_select %p27, 0, %s26
      %s29 = sadd.s32 1, %s20
      %s30 = scalar_select %p27, %s29, %s20
      %p31 = scmp.ge.s32.totalorder %s30, 2
      %s32 = scalar_select %p31, 0, %s30
      %s33 = ssub.s32 %s20, %s32
      %p34 = scmp.eq.s32.totalorder %s33, 0
      %s36 = sadd.s32 %s35, 1
      %s37 = scalar_select %p34, %s35, %s36
      %p40 = pneg %p34
      %p41 = scmp.eq.s32.totalorder %s13, 7
      %p42 = por %p40, %p41
      %p43 = scmp.ne.s32.totalorder %s35, %s38
      %p44 = scmp.eq.s32.totalorder %s13, 0
      %p45 = por %p43, %p44
      %p46 = scmp.ne.s32.totalorder %s35, %s38
      %p47 = scmp.eq.s32.totalorder %s18, 7
      %p48 = por %p46, %p47
      %p49 = scmp.ne.s32.totalorder %s38, %s39
      %p50 = scmp.eq.s32.totalorder %s18, 0
      %p51 = por %p49, %p50
      %p52 = scmp.ne.s32.totalorder %s38, %s39
      %p53 = scmp.eq.s32.totalorder %s19, 7
      %p54 = por %p52, %p53
      %p56 = scmp.ne.s32.totalorder %s39, %s55
      %p57 = scmp.eq.s32.totalorder %s19, 0
      %p58 = por %p56, %p57
      %s59 = ssub.s32 %s21, %s28
      %p60 = scmp.eq.s32.totalorder %s59, 0
      %s62 = sadd.s32 %s61, 1
      %s63 = scalar_select %p60, %s61, %s62
      %p66 = pneg %p60
      %p67 = scmp.eq.s32.totalorder %s13, 7
      %p68 = por %p66, %p67
      %p69 = scmp.ne.s32.totalorder %s61, %s64
      %p70 = scmp.eq.s32.totalorder %s13, 0
      %p71 = por %p69, %p70
      %p72 = scmp.ne.s32.totalorder %s61, %s64
      %p73 = scmp.eq.s32.totalorder %s18, 7
      %p74 = por %p72, %p73
      %p75 = scmp.ne.s32.totalorder %s64, %s65
      %p76 = scmp.eq.s32.totalorder %s18, 0
      %p77 = por %p75, %p76
      %p78 = scmp.ne.s32.totalorder %s64, %s65
      %p79 = scmp.eq.s32.totalorder %s19, 7
      %p80 = por %p78, %p79
      %p82 = scmp.ne.s32.totalorder %s65, %s81
      %p83 = scmp.eq.s32.totalorder %s19, 0
      %p84 = por %p82, %p83
      %s85 = ssub.s32 %s21, %s28
      %p86 = scmp.eq.s32.totalorder %s85, 0
      %s88 = sadd.s32 %s87, 1
      %s89 = scalar_select %p86, %s87, %s88
      %p92 = pneg %p86
      %p93 = scmp.eq.s32.totalorder %s13, 7
      %p94 = por %p92, %p93
      %p95 = scmp.ne.s32.totalorder %s87, %s90
      %p96 = scmp.eq.s32.totalorder %s13, 0
      %p97 = por %p95, %p96
      %p98 = scmp.ne.s32.totalorder %s87, %s90
      %p99 = scmp.eq.s32.totalorder %s18, 7
      %p100 = por %p98, %p99
      %p101 = scmp.ne.s32.totalorder %s90, %s91
      %p102 = scmp.eq.s32.totalorder %s18, 0
      %p103 = por %p101, %p102
      %p104 = scmp.ne.s32.totalorder %s90, %s91
      %p105 = scmp.eq.s32.totalorder %s19, 7
      %p106 = por %p104, %p105
      %p108 = scmp.ne.s32.totalorder %s91, %s107
      %p109 = scmp.eq.s32.totalorder %s19, 0
      %p110 = por %p108, %p109
      %s112 = sadd.s32 %s111, 1
      %p115 = scmp.eq.s32.totalorder %s13, 7
      %p116 = scmp.ne.s32.totalorder %s111, %s113
      %p117 = scmp.eq.s32.totalorder %s13, 0
      %p118 = por %p116, %p117
      %p119 = scmp.ne.s32.totalorder %s111, %s113
      %p120 = scmp.eq.s32.totalorder %s18, 7
      %p121 = por %p119, %p120
      %p122 = scmp.ne.s32.totalorder %s113, %s114
      %p123 = scmp.eq.s32.totalorder %s18, 0
      %p124 = por %p122, %p123
      %p125 = scmp.ne.s32.totalorder %s113, %s114
      %p126 = scmp.eq.s32.totalorder %s19, 7
      %p127 = por %p125, %p126
      %p129 = scmp.ne.s32.totalorder %s114, %s128
      %p130 = scmp.eq.s32.totalorder %s19, 0
      %p131 = por %p129, %p130
      %s132 = ssub.s32 %s20, %s32
      %p133 = scmp.eq.s32.totalorder %s132, 0
      %s135 = sadd.s32 %s134, 1
      %s136 = scalar_select %p133, %s134, %s135
      %p139 = pneg %p133
      %p140 = scmp.eq.s32.totalorder %s13, 7
      %p141 = por %p139, %p140
      %p142 = scmp.ne.s32.totalorder %s134, %s137
      %p143 = scmp.eq.s32.totalorder %s13, 0
      %p144 = por %p142, %p143
      %p145 = scmp.ne.s32.totalorder %s134, %s137
      %p146 = scmp.eq.s32.totalorder %s18, 7
      %p147 = por %p145, %p146
      %p148 = scmp.ne.s32.totalorder %s137, %s138
      %p149 = scmp.eq.s32.totalorder %s18, 0
      %p150 = por %p148, %p149
      %p151 = scmp.ne.s32.totalorder %s137, %s138
      %p152 = scmp.eq.s32.totalorder %s19, 7
      %p153 = por %p151, %p152
      %p155 = scmp.ne.s32.totalorder %s138, %s154
      %p156 = scmp.eq.s32.totalorder %s19, 0
      %p157 = por %p155, %p156
      %p158 = scmp.le.s32.totalorder 1, %s13
      %p159 = scmp.lt.s32.totalorder %s13, 9
      %p160 = pnand %p158, %p159
      %p161 = pneg %p160
      // Predicated region
      $region9: #{tpu_custom_call.1} parent=5 // pred_check
        _
      $region10: #{tpu_custom_call.1} parent=5 // pred_check_branch
        %163 = sbr.rel (%p160) target = $region12
      $region11: #{tpu_custom_call.1} parent=5 // pred_region
        %s164 = ssub.s32 %s13, 1
        // Predicated region
        $region13: #{tpu_custom_call.1} parent=11 // pred_check
          %p165 = pneg %p124
        $region14: #{tpu_custom_call.1} parent=11 // pred_check_branch
          %167 = sbr.rel (%p165) target = $region16
        $region15: #{tpu_custom_call.1} parent=11 // pred_region
          _
        $region16: #{tpu_custom_call.1} parent=11 // pred_fallthru
          _
      $region12: #{tpu_custom_call.1} parent=5 // pred_fallthru
        _
      %p168 = scmp.lt.s32.totalorder %s13, 8
      // Predicated region
      $region17: #{tpu_custom_call.1} parent=5 // pred_check
        %p169 = pneg %p168
      $region18: #{tpu_custom_call.1} parent=5 // pred_check_branch
        %171 = sbr.rel (%p169) target = $region20
      $region19: #{tpu_custom_call.1} parent=5 // pred_region
        // Predicated region
        $region21: #{tpu_custom_call.1} parent=19 // pred_check
          %p172 = pneg %p45
        $region22: #{tpu_custom_call.1} parent=19 // pred_check_branch
          %174 = sbr.rel (%p172) target = $region24
        $region23: #{tpu_custom_call.1} parent=19 // pred_region
          %p175 = scmp.lt.s32.totalorder %s20, 1
          %s176 = scalar_select %p175, %s20, 1
          %s177 = smul.addr %s176, 8
          %s178 = scalar_lea.vmem %s0, %s177
        $region24: #{tpu_custom_call.1} parent=19 // pred_fallthru
          _
        // Predicated region
        $region25: #{tpu_custom_call.1} parent=19 // pred_check
          %p179 = pneg %p71
        $region26: #{tpu_custom_call.1} parent=19 // pred_check_branch
          %181 = sbr.rel (%p179) target = $region28
        $region27: #{tpu_custom_call.1} parent=19 // pred_region
          %p182 = scmp.lt.s32.totalorder %s21, 3
          %s183 = scalar_select %p182, %s21, 3
          %s184 = smul.addr %s183, 4
          %s185 = smul.addr %s184, 8
          %s186 = scalar_lea.vmem %s1, %s185
        $region28: #{tpu_custom_call.1} parent=19 // pred_fallthru
          _
        // Predicated region
        $region29: #{tpu_custom_call.1} parent=19 // pred_check
          %p187 = pneg %p97
        $region30: #{tpu_custom_call.1} parent=19 // pred_check_branch
          %189 = sbr.rel (%p187) target = $region32
        $region31: #{tpu_custom_call.1} parent=19 // pred_region
          %p190 = scmp.lt.s32.totalorder %s21, 3
          %s191 = scalar_select %p190, %s21, 3
          %s192 = smul.addr %s191, 8
          %s193 = scalar_lea.vmem %s2, %s192
        $region32: #{tpu_custom_call.1} parent=19 // pred_fallthru
          _
      $region20: #{tpu_custom_call.1} parent=5 // pred_fallthru
        _
      %p194 = scmp.le.s32.totalorder 1, %s13
      %p195 = scmp.lt.s32.totalorder %s13, 9
      %p196 = pnand %p194, %p195
      %p197 = pneg %p196
      // Predicated region
      $region33: #{tpu_custom_call.1} parent=5 // pred_check
        _
      $region34: #{tpu_custom_call.1} parent=5 // pred_check_branch
        %199 = sbr.rel (%p196) target = $region36
      $region35: #{tpu_custom_call.1} parent=5 // pred_region
        %s200 = ssub.s32 %s13, 1
        %p201 = scmp.lt.s32.totalorder %s22, 1
        %s202 = scalar_select %p201, %s22, 1
        %s203 = smul.addr %s202, 8
        %s204 = scalar_lea.vmem %s0, %s203
        %p205 = pneg %p51
        %p206 = pneg %p48
        %p207 = scmp.lt.s32.totalorder %s23, 3
        %s208 = scalar_select %p207, %s23, 3
        %s209 = smul.addr %s208, 4
        %s210 = smul.addr %s209, 8
        %s211 = scalar_lea.vmem %s1, %s210
        %p212 = pneg %p77
        %p213 = pneg %p74
        %p214 = scmp.lt.s32.totalorder %s23, 3
        %s215 = scalar_select %p214, %s23, 3
        %s216 = smul.addr %s215, 8
        %s217 = scalar_lea.vmem %s2, %s216
        %p218 = pneg %p103
        %p219 = pneg %p100
        %p220 = pneg %p124
        %p221 = pneg %p121
        %p222 = pneg %p150
        %p223 = pneg %p147
        %s224 = sand.u32 %s137, 1
        %s225 = scalar_lea.sflag [#allocation4], %s224
        %s226 = sand.u32 %s137, 1
        %s227 = smul.addr %s226, 8
        %s228 = scalar_lea.vmem [#allocation3], %s227
        %p229 = scmp.lt.s32.totalorder %s22, 1
        %s230 = scalar_select %p229, %s22, 1
        %s231 = smul.addr %s230, 8
        %s232 = scalar_lea.vmem %s0, %s231
        %p233 = scmp.lt.s32.totalorder %s23, 3
        %s234 = scalar_select %p233, %s23, 3
        %s235 = smul.addr %s234, 4
        %s236 = smul.addr %s235, 8
        %s237 = scalar_lea.vmem %s1, %s236
        %p238 = scmp.lt.s32.totalorder %s23, 3
        %s239 = scalar_select %p238, %s23, 3
        %s240 = smul.addr %s239, 8
        %s241 = scalar_lea.vmem %s2, %s240
        %p242 = scmp.eq.s32.totalorder %s23, 0
        // Predicated region
        $region37: #{tpu_custom_call.1} parent=35 // pred_check
          %p243 = pneg %p242
        $region38: #{tpu_custom_call.1} parent=35 // pred_check_branch
          %245 = sbr.rel (%p243) target = $region40
        $region39: #{tpu_custom_call.1} parent=35 // pred_region
          %vm246 = vcmask 261120
          %247 = vst.msk [vmem:[#allocation2] sm:$0xff] %vm246, 0.0
        $region40: #{tpu_custom_call.1} parent=35 // pred_fallthru
          _
        %v248 = vld [vmem:[%s232] sm:$0xff]
        %v249 = vld [vmem:[%s237] sm:$0xff]
        %v250 = vld [vmem:[%s237 + $0x8] sm:$0xff]
        %v251 = vld [vmem:[%s237 + $0x10] sm:$0xff]
        %v252 = vld [vmem:[%s237 + $0x18] sm:$0xff]
        %v253 = vld [vmem:[%s241] sm:$0xff]
        %vm254 = vcmask 261120
        %v256 = vsel %vm254, %v248, 0
        %258 = vmatprep.subr.mxu0 0.0
        %259 = vmatpush1.msra.mxu0 0.0
        %260 = vmatprep.subr.mxu0 0.0
        %261 = vmatpush1.msra.mxu0 0.0
        %262 = vmatprep.subr.mxu0 0.0
        %263 = vmatpush1.msra.mxu0 0.0
        %264 = vmatprep.subr.mxu0 0.0
        %265 = vmatpush1.msra.mxu0 0.0
        %266 = vmatprep.subr.mxu0 0.0
        %267 = vmatpush1.msra.mxu0 0.0
        %268 = vmatprep.subr.mxu0 0.0
        %269 = vmatpush1.msra.mxu0 0.0
        %270 = vmatprep.subr.mxu0 0.0
        %271 = vmatpush1.msra.mxu0 0.0
        %272 = vmatprep.subr.mxu0 0.0
        %273 = vmatpush1.msra.mxu0 0.0
        %274 = vmatprep.subr.mxu0 0.0
        %275 = vmatpush1.msra.mxu0 0.0
        %276 = vmatprep.subr.mxu0 0.0
        %277 = vmatpush1.msra.mxu0 0.0
        %278 = vmatprep.subr.mxu0 0.0
        %279 = vmatpush1.msra.mxu0 0.0
        %280 = vmatprep.subr.mxu0 0.0
        %281 = vmatpush1.msra.mxu0 0.0
        %282 = vmatprep.subr.mxu0 0.0
        %283 = vmatpush1.msra.mxu0 %v252
        %284 = vmatprep.subr.mxu0 0.0
        %285 = vmatpush1.msra.mxu0 %v251
        %286 = vmatprep.subr.mxu0 0.0
        %287 = vmatpush1.msra.mxu0 %v250
        %288 = vmatprep.subr.mxu0 0.0
        %289 = vmatpush1.msra.mxu0 %v249
        %290 = vmatprep.subr.mxu0 0.0
        %291 = vmatpush2.msra.mxu0 0.0
        %292 = vmatprep.subr.mxu0 0.0
        %293 = vmatpush2.msra.mxu0 0.0
        %294 = vmatprep.subr.mxu0 0.0
        %295 = vmatpush2.msra.mxu0 0.0
        %296 = vmatprep.subr.mxu0 0.0
        %297 = vmatpush2.msra.mxu0 0.0
        %298 = vmatprep.subr.mxu0 0.0
        %299 = vmatpush2.msra.mxu0 0.0
        %300 = vmatprep.subr.mxu0 0.0
        %301 = vmatpush2.msra.mxu0 0.0
        %302 = vmatprep.subr.mxu0 0.0
        %303 = vmatpush2.msra.mxu0 0.0
        %304 = vmatprep.subr.mxu0 0.0
        %305 = vmatpush2.msra.mxu0 0.0
        %306 = vmatprep.subr.mxu0 0.0
        %307 = vmatpush2.msra.mxu0 0.0
        %308 = vmatprep.subr.mxu0 0.0
        %309 = vmatpush2.msra.mxu0 0.0
        %310 = vmatprep.subr.mxu0 0.0
        %311 = vmatpush2.msra.mxu0 0.0
        %312 = vmatprep.subr.mxu0 0.0
        %313 = vmatpush2.msra.mxu0 0.0
        %314 = vmatprep.subr.mxu0 0.0
        %315 = vmatpush2.msra.mxu0 0.0
        %316 = vmatprep.subr.mxu0 0.0
        %317 = vmatpush2.msra.mxu0 0.0
        %318 = vmatprep.subr.mxu0 0.0
        %319 = vmatpush2.msra.mxu0 0.0
        %320 = vmatprep.subr.mxu0 0.0
        %321 = vmatpush2.msra.mxu0 0.0
        %322 = vmatprep.mubr.f32.mxu0 0.0
        %323 = vmatmul.mubr.f32.gmra.mxu0 %v256
        %v324 = vpop.f32.mrf.mxu0
        %v325 = vadd.f32 0.0, %v324
        %v326 = vpop.f32.mrf.mxu0
        %327 = vdwg.mxu0
        %329 = vrot.lane.b32.xlu0 %v325, 120
        %v330 = vpop.permute.xlu0 %329
        %vm331 = vcmask 64512
        %v332 = vsel %vm331, %v325, 0
        %v334 = vsel %vm331, %v330, 0
        %336 = vmatprep.subr.mxu0 0.0
        %337 = vmatpush1.xpose.msra.mxu0 0.0
        %338 = vmatprep.subr.mxu0 0.0
        %339 = vmatpush1.xpose.msra.mxu0 0.0
        %340 = vmatprep.subr.mxu0 0.0
        %341 = vmatpush1.xpose.msra.mxu0 0.0
        %342 = vmatprep.subr.mxu0 0.0
        %343 = vmatpush1.xpose.msra.mxu0 0.0
        %344 = vmatprep.subr.mxu0 0.0
        %345 = vmatpush1.xpose.msra.mxu0 0.0
        %346 = vmatprep.subr.mxu0 0.0
        %347 = vmatpush1.xpose.msra.mxu0 0.0
        %348 = vmatprep.subr.mxu0 0.0
        %349 = vmatpush1.xpose.msra.mxu0 0.0
        %350 = vmatprep.subr.mxu0 0.0
        %351 = vmatpush1.xpose.msra.mxu0 0.0
        %352 = vmatprep.subr.mxu0 0.0
        %353 = vmatpush1.xpose.msra.mxu0 0.0
        %354 = vmatprep.subr.mxu0 0.0
        %355 = vmatpush1.xpose.msra.mxu0 0.0
        %356 = vmatprep.subr.mxu0 0.0
        %357 = vmatpush1.xpose.msra.mxu0 0.0
        %358 = vmatprep.subr.mxu0 0.0
        %359 = vmatpush1.xpose.msra.mxu0 0.0
        %360 = vmatprep.subr.mxu0 0.0
        %361 = vmatpush1.xpose.msra.mxu0 0.0
        %362 = vmatprep.subr.mxu0 0.0
        %363 = vmatpush1.xpose.msra.mxu0 0.0
        %364 = vmatprep.subr.mxu0 0.0
        %365 = vmatpush1.xpose.msra.mxu0 0.0
        %366 = vmatprep.subr.mxu0 0.0
        %367 = vmatpush1.xpose.msra.mxu0 %v334
        %368 = vmatprep.subr.mxu0 0.0
        %369 = vmatpush2.xpose.msra.mxu0 0.0
        %370 = vmatprep.subr.mxu0 0.0
        %371 = vmatpush2.xpose.msra.mxu0 0.0
        %372 = vmatprep.subr.mxu0 0.0
        %373 = vmatpush2.xpose.msra.mxu0 0.0
        %374 = vmatprep.subr.mxu0 0.0
        %375 = vmatpush2.xpose.msra.mxu0 0.0
        %376 = vmatprep.subr.mxu0 0.0
        %377 = vmatpush2.xpose.msra.mxu0 0.0
        %378 = vmatprep.subr.mxu0 0.0
        %379 = vmatpush2.xpose.msra.mxu0 0.0
        %380 = vmatprep.subr.mxu0 0.0
        %381 = vmatpush2.xpose.msra.mxu0 0.0
        %382 = vmatprep.subr.mxu0 0.0
        %383 = vmatpush2.xpose.msra.mxu0 0.0
        %384 = vmatprep.subr.mxu0 0.0
        %385 = vmatpush2.xpose.msra.mxu0 0.0
        %386 = vmatprep.subr.mxu0 0.0
        %387 = vmatpush2.xpose.msra.mxu0 0.0
        %388 = vmatprep.subr.mxu0 0.0
        %389 = vmatpush2.xpose.msra.mxu0 0.0
        %390 = vmatprep.subr.mxu0 0.0
        %391 = vmatpush2.xpose.msra.mxu0 0.0
        %392 = vmatprep.subr.mxu0 0.0
        %393 = vmatpush2.xpose.msra.mxu0 0.0
        %394 = vmatprep.subr.mxu0 0.0
        %395 = vmatpush2.xpose.msra.mxu0 0.0
        %396 = vmatprep.subr.mxu0 0.0
        %397 = vmatpush2.xpose.msra.mxu0 0.0
        %398 = vmatprep.subr.mxu0 0.0
        %399 = vmatpush2.xpose.msra.mxu0 0.0
        %400 = vmatprep.mubr.f32.mxu0 0.0
        %401 = vmatmul.mubr.f32.gmra.mxu0 %v332
        %v402 = vpop.f32.mrf.mxu0
        %v403 = vadd.f32 0.0, %v402
        %v404 = vpop.f32.mrf.mxu0
        %405 = vdwg.mxu0
        %v406 = vsel %vm331, %v403, -inf
        %407 = vmax.xlane.f32.xlu0 %v406
        %v408 = vpop.xlane.xlu0 %407
        %v409 = vsub.f32 %v403, %v408
        %v410 = vmul.f32 %v409, 1.442695
        %v411 = vpow.pop %v410
        %v412 = vsel %vm331, %v411, 0.0
        %413 = vadd.xlane.f32.xlu0 %v412
        %v414 = vpop.xlane.xlu0 %413
        %415 = vrot.lane.b32.xlu0 %v325, 112
        %v416 = vpop.permute.xlu0 %415
        %v419 = vsel %vm331, %v411, 0
        %421 = vmatprep.subr.mxu0 0.0
        %422 = vmatpush1.msra.mxu0 0.0
        %423 = vmatprep.subr.mxu0 0.0
        %424 = vmatpush1.msra.mxu0 0.0
        %425 = vmatprep.subr.mxu0 0.0
        %426 = vmatpush1.msra.mxu0 0.0
        %427 = vmatprep.subr.mxu0 0.0
        %428 = vmatpush1.msra.mxu0 0.0
        %429 = vmatprep.subr.mxu0 0.0
        %430 = vmatpush1.msra.mxu0 0.0
        %431 = vmatprep.subr.mxu0 0.0
        %432 = vmatpush1.msra.mxu0 0.0
        %433 = vmatprep.subr.mxu0 0.0
        %434 = vmatpush1.msra.mxu0 0.0
        %435 = vmatprep.subr.mxu0 0.0
        %436 = vmatpush1.msra.mxu0 0.0
        %437 = vmatprep.subr.mxu0 0.0
        %438 = vmatpush1.msra.mxu0 0.0
        %439 = vmatprep.subr.mxu0 0.0
        %440 = vmatpush1.msra.mxu0 0.0
        %441 = vmatprep.subr.mxu0 0.0
        %442 = vmatpush1.msra.mxu0 0.0
        %443 = vmatprep.subr.mxu0 0.0
        %444 = vmatpush1.msra.mxu0 0.0
        %445 = vmatprep.subr.mxu0 0.0
        %446 = vmatpush1.msra.mxu0 0.0
        %447 = vmatprep.subr.mxu0 0.0
        %448 = vmatpush1.msra.mxu0 0.0
        %449 = vmatprep.subr.mxu0 0.0
        %450 = vmatpush1.msra.mxu0 0.0
        %451 = vmatprep.subr.mxu0 0.0
        %452 = vmatpush1.msra.mxu0 %v416
        %453 = vmatprep.subr.mxu0 0.0
        %454 = vmatpush2.msra.mxu0 0.0
        %455 = vmatprep.subr.mxu0 0.0
        %456 = vmatpush2.msra.mxu0 0.0
        %457 = vmatprep.subr.mxu0 0.0
        %458 = vmatpush2.msra.mxu0 0.0
        %459 = vmatprep.subr.mxu0 0.0
        %460 = vmatpush2.msra.mxu0 0.0
        %461 = vmatprep.subr.mxu0 0.0
        %462 = vmatpush2.msra.mxu0 0.0
        %463 = vmatprep.subr.mxu0 0.0
        %464 = vmatpush2.msra.mxu0 0.0
        %465 = vmatprep.subr.mxu0 0.0
        %466 = vmatpush2.msra.mxu0 0.0
        %467 = vmatprep.subr.mxu0 0.0
        %468 = vmatpush2.msra.mxu0 0.0
        %469 = vmatprep.subr.mxu0 0.0
        %470 = vmatpush2.msra.mxu0 0.0
        %471 = vmatprep.subr.mxu0 0.0
        %472 = vmatpush2.msra.mxu0 0.0
        %473 = vmatprep.subr.mxu0 0.0
        %474 = vmatpush2.msra.mxu0 0.0
        %475 = vmatprep.subr.mxu0 0.0
        %476 = vmatpush2.msra.mxu0 0.0
        %477 = vmatprep.subr.mxu0 0.0
        %478 = vmatpush2.msra.mxu0 0.0
        %479 = vmatprep.subr.mxu0 0.0
        %480 = vmatpush2.msra.mxu0 0.0
        %481 = vmatprep.subr.mxu0 0.0
        %482 = vmatpush2.msra.mxu0 0.0
        %483 = vmatprep.subr.mxu0 0.0
        %484 = vmatpush2.msra.mxu0 0.0
        %485 = vmatprep.mubr.f32.mxu0 0.0
        %486 = vmatmul.mubr.f32.gmra.mxu0 %v419
        %v487 = vpop.f32.mrf.mxu0
        %v488 = vadd.f32 0.0, %v487
        %v489 = vpop.f32.mrf.mxu0
        %490 = vdwg.mxu0
        %v491 = vrcp.pop %v414
        %v492 = vmul.f32 %v488, %v491
        %v493 = vld [vmem:[#allocation2] sm:$0xff]
        %v495 = vsel %vm331, %v492, 0
        %497 = vmatprep.subr.mxu0 0.0
        %498 = vmatpush1.msra.mxu0 0.0
        %499 = vmatprep.subr.mxu0 0.0
        %500 = vmatpush1.msra.mxu0 0.0
        %501 = vmatprep.subr.mxu0 0.0
        %502 = vmatpush1.msra.mxu0 0.0
        %503 = vmatprep.subr.mxu0 0.0
        %504 = vmatpush1.msra.mxu0 0.0
        %505 = vmatprep.subr.mxu0 0.0
        %506 = vmatpush1.msra.mxu0 0.0
        %507 = vmatprep.subr.mxu0 0.0
        %508 = vmatpush1.msra.mxu0 0.0
        %509 = vmatprep.subr.mxu0 0.0
        %510 = vmatpush1.msra.mxu0 0.0
        %511 = vmatprep.subr.mxu0 0.0
        %512 = vmatpush1.msra.mxu0 0.0
        %513 = vmatprep.subr.mxu0 0.0
        %514 = vmatpush1.msra.mxu0 0.0
        %515 = vmatprep.subr.mxu0 0.0
        %516 = vmatpush1.msra.mxu0 0.0
        %517 = vmatprep.subr.mxu0 0.0
        %518 = vmatpush1.msra.mxu0 0.0
        %519 = vmatprep.subr.mxu0 0.0
        %520 = vmatpush1.msra.mxu0 0.0
        %521 = vmatprep.subr.mxu0 0.0
        %522 = vmatpush1.msra.mxu0 0.0
        %523 = vmatprep.subr.mxu0 0.0
        %524 = vmatpush1.msra.mxu0 0.0
        %525 = vmatprep.subr.mxu0 0.0
        %526 = vmatpush1.msra.mxu0 0.0
        %527 = vmatprep.subr.mxu0 0.0
        %528 = vmatpush1.msra.mxu0 %v253
        %529 = vmatprep.subr.mxu0 0.0
        %530 = vmatpush2.msra.mxu0 0.0
        %531 = vmatprep.subr.mxu0 0.0
        %532 = vmatpush2.msra.mxu0 0.0
        %533 = vmatprep.subr.mxu0 0.0
        %534 = vmatpush2.msra.mxu0 0.0
        %535 = vmatprep.subr.mxu0 0.0
        %536 = vmatpush2.msra.mxu0 0.0
        %537 = vmatprep.subr.mxu0 0.0
        %538 = vmatpush2.msra.mxu0 0.0
        %539 = vmatprep.subr.mxu0 0.0
        %540 = vmatpush2.msra.mxu0 0.0
        %541 = vmatprep.subr.mxu0 0.0
        %542 = vmatpush2.msra.mxu0 0.0
        %543 = vmatprep.subr.mxu0 0.0
        %544 = vmatpush2.msra.mxu0 0.0
        %545 = vmatprep.subr.mxu0 0.0
        %546 = vmatpush2.msra.mxu0 0.0
        %547 = vmatprep.subr.mxu0 0.0
        %548 = vmatpush2.msra.mxu0 0.0
        %549 = vmatprep.subr.mxu0 0.0
        %550 = vmatpush2.msra.mxu0 0.0
        %551 = vmatprep.subr.mxu0 0.0
        %552 = vmatpush2.msra.mxu0 0.0
        %553 = vmatprep.subr.mxu0 0.0
        %554 = vmatpush2.msra.mxu0 0.0
        %555 = vmatprep.subr.mxu0 0.0
        %556 = vmatpush2.msra.mxu0 0.0
        %557 = vmatprep.subr.mxu0 0.0
        %558 = vmatpush2.msra.mxu0 0.0
        %559 = vmatprep.subr.mxu0 0.0
        %560 = vmatpush2.msra.mxu0 0.0
        %561 = vmatprep.mubr.f32.mxu0 0.0
        %562 = vmatmul.mubr.f32.gmra.mxu0 %v495
        %v563 = vpop.f32.mrf.mxu0
        %v564 = vadd.f32 0.0, %v563
        %v565 = vpop.f32.mrf.mxu0
        %566 = vdwg.mxu0
        %v567 = vadd.f32 %v493, %v564
        %568 = vst.msk [vmem:[#allocation2] sm:$0xff] %vm254, %v567
        %p569 = scmp.eq.s32.totalorder %s23, 3
        // Predicated region
        $region41: #{tpu_custom_call.1} parent=35 // pred_check
          %p570 = pneg %p569
        $region42: #{tpu_custom_call.1} parent=35 // pred_check_branch
          %572 = sbr.rel (%p570) target = $region44
        $region43: #{tpu_custom_call.1} parent=35 // pred_region
          %v573 = vld [vmem:[#allocation2] sm:$0xff]
          %v574 = vld [vmem:[%s3] sm:$0x1]
          %v576 = vlaneseq
          %v577 = vshrl.u32 %v576, 7
          %v578 = vsub.s32 0, %v577
          %v579 = vrot.slane %v574, %v578
          %v581 = vadd.f32 %v573, %v579
          %582 = vst.msk [vmem:[%s228] sm:$0xff] %vm254, %v581
        $region44: #{tpu_custom_call.1} parent=35 // pred_fallthru
          _
        %s583 = sand.u32 %s137, 1
        %s584 = scalar_lea.sflag [#allocation4], %s583
        %s585 = sand.u32 %s137, 1
        %s586 = smul.addr %s585, 8
        %s587 = scalar_lea.vmem [#allocation3], %s586
        // Predicated region
        $region45: #{tpu_custom_call.1} parent=35 // pred_check
          %p588 = pneg %p147
        $region46: #{tpu_custom_call.1} parent=35 // pred_check_branch
          %590 = sbr.rel (%p588) target = $region48
        $region47: #{tpu_custom_call.1} parent=35 // pred_region
          %s592 = ssub.s32 128, 128
          %593 = vsyncadd %s584, %s592
          %s594 = smul.addr %s22, 128
          %s595 = scalar_lea.hbm %s4, %s594
          %s597 = sshll.u32 %s587, 4
          %s598 = int_to_ptr.vmem [resolvable:$true] %s597
          %600 = dma.vmem_to_hbm [thread:$0]  %s598, 128, %s595, %s584
        $region48: #{tpu_custom_call.1} parent=35 // pred_fallthru
          _
      $region36: #{tpu_custom_call.1} parent=5 // pred_fallthru
        _
      %p601 = scmp.le.s32.totalorder 2, %s13
      // Predicated region
      $region49: #{tpu_custom_call.1} parent=5 // pred_check
        %p602 = pneg %p601
      $region50: #{tpu_custom_call.1} parent=5 // pred_check_branch
        %604 = sbr.rel (%p602) target = $region52
      $region51: #{tpu_custom_call.1} parent=5 // pred_region
        %s605 = ssub.s32 %s13, 2
        // Predicated region
        $region53: #{tpu_custom_call.1} parent=51 // pred_check
          %p606 = pneg %p153
        $region54: #{tpu_custom_call.1} parent=51 // pred_check_branch
          %608 = sbr.rel (%p606) target = $region56
        $region55: #{tpu_custom_call.1} parent=51 // pred_region
          %s609 = sand.u32 %s138, 1
          %s610 = scalar_lea.sflag [#allocation4], %s609
          %s611 = sand.u32 %s138, 1
          %s612 = smul.addr %s611, 8
          %s613 = scalar_lea.vmem [#allocation3], %s612
          %614 = dma.done %s610, 128
        $region56: #{tpu_custom_call.1} parent=51 // pred_fallthru
          _
      $region52: #{tpu_custom_call.1} parent=5 // pred_fallthru
        _
    $region6: #{tpu_custom_call.1} parent=1 // loop_footer
      %s17 = sadd.s32 1, %s13
    $region7: #{tpu_custom_call.1} parent=1 // loop_footer_branch
      %12 = sbr.rel target = $region3
    $region8: #{tpu_custom_call.1} parent=1 // loop_exit
      _
    %615 = vsyncpa [#allocation4], 1
    %s616 = scalar_lea.sflag [#allocation4], 1
    %617 = vsyncpa %s616, 1

</llo_original>
